<compile_context>
chip_gen: v5e
topology: v5e:2x2
jax: 0.10.0
libtpu: 0.0.40
codegen_flags: <defaults>
</compile_context>

<pallas_src>
import jax
import jax.numpy as jnp
import numpy as np
from jax.experimental import pallas as pl
from jax.experimental.pallas import tpu as pltpu


def _mlp_kernel(xt_ref, w1_ref, b1_ref, w2_ref, b2_ref, o_ref):
    """Transposed MLP: oT = W2 @ relu(W1 @ xT + b1) + b2, batch on the lane axis.

    xt_ref : (n_features, N)        VMEM
    w1_ref : (n_hidden, n_features) VMEM
    b1_ref : (n_hidden, 1)          VMEM (broadcast over lanes)
    w2_ref : (n_hidden, 1)          VMEM column          when n_output == 1
             (n_output, n_hidden)   VMEM                 otherwise
    b2_ref : (1,)                   SMEM scalar          when n_output == 1
             (n_output, 1)          VMEM column          otherwise
    o_ref  : (n_output, N)          VMEM, lane-dense
    """
    n_features = xt_ref.shape[0]
    n_output = o_ref.shape[0]

    xt = xt_ref[...]                                           # (F, N)
    if n_features == 1:
        # K=1 contraction is an outer product: keep it on the 4-wide VALU,
        # don't pad a 1-wide K through the MXU systolic array.
        h = w1_ref[...] * xt                                   # (H,1)*(1,N) -> (H,N)
    else:
        h = jnp.dot(w1_ref[...], xt, preferred_element_type=jnp.float32)

    h = jnp.maximum(h + b1_ref[...], 0.0)                      # bias bcast over lanes + ReLU

    if n_output == 1:
        # (H,N)*(H,1) multiply + sublane reduce (XLU) -> one lane-dense row (1, N).
        out = jnp.sum(h * w2_ref[...], axis=0, keepdims=True) + b2_ref[0]
    else:
        out = jnp.dot(w2_ref[...], h, preferred_element_type=jnp.float32) + b2_ref[...]

    o_ref[...] = out.astype(o_ref.dtype)


def prepare_params(w1, b1, w2, b2):
    """One-time re-layout of torch-style Linear params (hoisted out of the per-call path).

    w1: (n_hidden, n_features); b1: (n_hidden,); w2: (n_output, n_hidden); b2: (n_output,)
    """
    n_hidden, _ = w1.shape
    n_output = w2.shape[0]
    w1k = jnp.asarray(w1, jnp.float32)                        # (H, F), used as-is (transposed compute)
    b1k = jnp.asarray(b1, jnp.float32).reshape(n_hidden, 1)   # column, broadcast over lanes
    if n_output == 1:
        w2k = jnp.asarray(w2, jnp.float32).reshape(n_hidden, 1)  # column for the VPU path
        b2k = jnp.asarray(b2, jnp.float32).reshape(1)            # SMEM scalar
    else:
        w2k = jnp.asarray(w2, jnp.float32)                       # (O, H)
        b2k = jnp.asarray(b2, jnp.float32).reshape(n_output, 1)  # VMEM column
    return w1k, b1k, w2k, b2k


def net_forward(x, w1k, b1k, w2k, b2k):
    """x: (N, n_features) f32. Params from prepare_params. Returns (N, n_output)."""
    n, n_features = x.shape
    n_hidden = w1k.shape[0]
    single_out = (b2k.ndim == 1)
    n_output = 1 if single_out else b2k.shape[0]

    x = jnp.asarray(x, jnp.float32)
    # Put batch on the 128-wide lane axis. For n_features == 1 this is a free reshape.
    xt = x.reshape(1, n) if n_features == 1 else x.T          # (F, N)

    full = lambda shape: pl.BlockSpec(shape, lambda: (0,) * len(shape))
    b2_spec = (pl.BlockSpec(memory_space=pltpu.MemorySpace.SMEM)
               if single_out else full(b2k.shape))

    flops = 2 * n * n_hidden * (n_features + n_output)
    bytes_accessed = 4 * int(xt.size + w1k.size + b1k.size + w2k.size + b2k.size
                             + n * n_output)

    out_t = pl.pallas_call(
        _mlp_kernel,
        out_shape=jax.ShapeDtypeStruct((n_output, n), jnp.float32),
        grid=(),  # tiny problem: whole-array resident in VMEM, single invocation
        # TODO(synk): if batch is scaled up, tile the lane (batch) axis with a grid
        # and dimension_semantics=("parallel",) to use both v7x TensorCores and
        # keep the resident footprint under its 64 MiB VMEM.
        in_specs=[
            full(xt.shape),
            full(w1k.shape),
            full(b1k.shape),
            full(w2k.shape),
            b2_spec,
        ],
        out_specs=full((n_output, n)),
        cost_estimate=pl.CostEstimate(flops=flops, transcendentals=0,
                                      bytes_accessed=bytes_accessed),
    )(xt, w1k, b1k, w2k, b2k)

    # (n_output, N) -> (N, n_output); a free reshape when n_output == 1.
    return out_t.reshape(n, 1) if single_out else out_t.T


def init_params(key, n_features, n_hidden, n_output):
    """Deterministic init mimicking torch.nn.Linear default U(-1/sqrt(fan_in), +1/sqrt(fan_in))."""
    k1, k2, k3, k4 = jax.random.split(key, 4)
    bound1 = 1.0 / np.sqrt(n_features)
    bound2 = 1.0 / np.sqrt(n_hidden)
    w1 = jax.random.uniform(k1, (n_hidden, n_features), jnp.float32, -bound1, bound1)
    b1 = jax.random.uniform(k2, (n_hidden,), jnp.float32, -bound1, bound1)
    w2 = jax.random.uniform(k3, (n_output, n_hidden), jnp.float32, -bound2, bound2)
    b2 = jax.random.uniform(k4, (n_output,), jnp.float32, -bound2, bound2)
    return w1, b1, w2, b2


if __name__ == "__main__":
    # Shapes implied by the reference script: x = linspace(-1, 1, 100).unsqueeze(1)
    # i.e. (batch=100, n_features=1); hidden small, single regression output.
    n_features, n_hidden, n_output = 1, 32, 1
    batch = 100

    key = jax.random.PRNGKey(0)
    w1, b1, w2, b2 = init_params(key, n_features, n_hidden, n_output)
    params = prepare_params(w1, b1, w2, b2)   # hoisted one-time re-layout

    x = jnp.linspace(-1.0, 1.0, batch, dtype=jnp.float32).reshape(batch, 1)

    forward = jax.jit(net_forward)
    out = jax.block_until_ready(forward(x, *params))

    # Pure-numpy f32 reference (same math as the PyTorch module, MXU-independent).
    x_np, w1_np, b1_np = np.asarray(x), np.asarray(w1), np.asarray(b1)
    w2_np, b2_np = np.asarray(w2), np.asarray(b2)
    ref = np.maximum(x_np @ w1_np.T + b1_np, 0.0) @ w2_np.T + b2_np

    assert out.shape == (batch, n_output)
    np.testing.assert_allclose(np.asarray(out), ref, rtol=1e-5, atol=1e-5)

    print("KERNEL_OK")
</pallas_src>

<mosaic_0001>
module attributes {stable_mosaic.version = 11 : i64} {
  func.func @_mlp_kernel(%arg0: memref<1x100xf32, #tpu.memory_space<vmem>>, %arg1: memref<32x1xf32, #tpu.memory_space<vmem>>, %arg2: memref<32x1xf32, #tpu.memory_space<vmem>>, %arg3: memref<32x1xf32, #tpu.memory_space<vmem>>, %arg4: memref<1xf32, #tpu.memory_space<smem>>, %arg5: memref<1x100xf32, #tpu.memory_space<vmem>>) attributes {dimension_semantics = [], scalar_prefetch = 0 : i64, scratch_operands = 0 : i64, tpu.core_type = #tpu.core_type<tc>} {
    %c0 = arith.constant 0 : index
    %c0_0 = arith.constant 0 : index
    %0 = vector.load %arg0[%c0, %c0_0] : memref<1x100xf32, #tpu.memory_space<vmem>>, vector<1x100xf32>
    %c0_1 = arith.constant 0 : index
    %c0_2 = arith.constant 0 : index
    %1 = vector.load %arg1[%c0_1, %c0_2] : memref<32x1xf32, #tpu.memory_space<vmem>>, vector<32x1xf32>
    %2 = vector.broadcast %1 : vector<32x1xf32> to vector<32x100xf32>
    %3 = vector.broadcast %0 : vector<1x100xf32> to vector<32x100xf32>
    %4 = arith.mulf %2, %3 : vector<32x100xf32>
    %c0_3 = arith.constant 0 : index
    %c0_4 = arith.constant 0 : index
    %5 = vector.load %arg2[%c0_3, %c0_4] : memref<32x1xf32, #tpu.memory_space<vmem>>, vector<32x1xf32>
    %6 = vector.broadcast %5 : vector<32x1xf32> to vector<32x100xf32>
    %7 = arith.addf %4, %6 : vector<32x100xf32>
    %cst = arith.constant 0.000000e+00 : f32
    %8 = vector.broadcast %cst : f32 to vector<32x100xf32>
    %9 = arith.maximumf %7, %8 : vector<32x100xf32>
    %c0_5 = arith.constant 0 : index
    %c0_6 = arith.constant 0 : index
    %10 = vector.load %arg3[%c0_5, %c0_6] : memref<32x1xf32, #tpu.memory_space<vmem>>, vector<32x1xf32>
    %11 = vector.broadcast %10 : vector<32x1xf32> to vector<32x100xf32>
    %12 = arith.mulf %9, %11 : vector<32x100xf32>
    %cst_7 = arith.constant dense<0.000000e+00> : vector<100xf32>
    %13 = vector.multi_reduction <add>, %12, %cst_7 [0] : vector<32x100xf32> to vector<100xf32>
    %14 = vector.shape_cast %13 : vector<100xf32> to vector<1x100xf32>
    %c0_8 = arith.constant 0 : index
    %15 = memref.load %arg4[%c0_8] : memref<1xf32, #tpu.memory_space<smem>>
    %16 = vector.broadcast %15 : f32 to vector<1x100xf32>
    %17 = arith.addf %14, %16 : vector<1x100xf32>
    %c0_9 = arith.constant 0 : index
    %c0_10 = arith.constant 0 : index
    %18 = vector.load %arg5[%c0_9, %c0_10] : memref<1x100xf32, #tpu.memory_space<vmem>>, vector<1x100xf32>
    tpu.vector_store %arg5[%c0_9, %c0_10], %17 {strides = array<i32>} : memref<1x100xf32, #tpu.memory_space<vmem>>, vector<1x100xf32>,
    return
  }
}

</mosaic_0001>

<llo_original>
// kernel: net_forward.1
$region0: #{net_forward.1}
  #allocation0 [shape = 'u32[]', space=smem, size = 0x4, offset = 0x4, fixed_abs, tag = 'smem constant byte address 0x4 - core index']
  #allocation1 [shape = 'u32[72,128]{1,0:T(1,128)}', space=vmem, size = 0x9000, scoped, tag = 'internal scratch']
  #allocation2 [shape = 'f32[1]{0:T(128)S(6)}', space=smem, size = 0x200, scoped, tag = 'scoped memory for net_forward.1']
  %s0 = inlined_call_operand.vmem [shape: f32[1,100], index: 0, kind: input, shape index: {}]
  %s1 = inlined_call_operand.vmem [shape: f32[32,1], index: 1, kind: input, shape index: {}]
  %s2 = inlined_call_operand.vmem [shape: f32[32,1], index: 2, kind: input, shape index: {}]
  %s3 = inlined_call_operand.vmem [shape: f32[32,1], index: 3, kind: input, shape index: {}]
  %s4 = inlined_call_operand.<no memory space> [shape: f32[1], index: 4, kind: input, shape index: {}]
  %s5 = inlined_call_operand.hbm [shape: f32[1,100], index: 5, kind: output, shape index: {}]
  %s6 = sld [smem:[#allocation0]]
  $region30: #{net_forward.1} parent=0
    _
  %s8 = ssub.s32 1, %s6
  %s9 = scalar_select 0, %s8, %s6
  %10 = sst [smem:[#allocation2]] %s4
  $region1: #{net_forward.1} parent=0
    #allocation3 [shape = 'u8[512]{0}', space=vmem, size = 0x400, scoped, tag = 'output window, operand 0, single buffered']
    #allocation4 [shape = 's32[1]{0}', space=sflag, size = 0x4, scoped, tag = 'scoped memory for net_forward.1']
    %11 = vsyncpa [#allocation4], 0
    // Predicated region
    $region2: #{net_forward.1} parent=1 // pred_check
      _
    $region3: #{net_forward.1} parent=1 // pred_check_branch
      %13 = sbr.rel (0) target = $region5
    $region4: #{net_forward.1} parent=1 // pred_region
      _
    $region5: #{net_forward.1} parent=1 // pred_fallthru
      _
    // Predicated region
    $region6: #{net_forward.1} parent=1 // pred_check
      _
    $region7: #{net_forward.1} parent=1 // pred_check_branch
      %15 = sbr.rel (0) target = $region9
    $region8: #{net_forward.1} parent=1 // pred_region
      _
    $region9: #{net_forward.1} parent=1 // pred_fallthru
      _
    // Predicated region
    $region10: #{net_forward.1} parent=1 // pred_check
      _
    $region11: #{net_forward.1} parent=1 // pred_check_branch
      %17 = sbr.rel (0) target = $region13
    $region12: #{net_forward.1} parent=1 // pred_region
      _
    $region13: #{net_forward.1} parent=1 // pred_fallthru
      _
    // Predicated region
    $region14: #{net_forward.1} parent=1 // pred_check
      _
    $region15: #{net_forward.1} parent=1 // pred_check_branch
      %19 = sbr.rel (0) target = $region17
    $region16: #{net_forward.1} parent=1 // pred_region
      _
    $region17: #{net_forward.1} parent=1 // pred_fallthru
      _
    // Predicated region
    $region18: #{net_forward.1} parent=1 // pred_check
      _
    $region19: #{net_forward.1} parent=1 // pred_check_branch
      %21 = sbr.rel (0) target = $region21
    $region20: #{net_forward.1} parent=1 // pred_region
      _
    $region21: #{net_forward.1} parent=1 // pred_fallthru
      _
    %v22 = vld [vmem:[%s0] sm:$0x1]
    %v23 = vld [vmem:[%s1] sm:$0xff]
    %v24 = vld [vmem:[%s1 + $0x8] sm:$0xff]
    %v25 = vld [vmem:[%s1 + $0x10] sm:$0xff]
    %v26 = vld [vmem:[%s1 + $0x18] sm:$0xff]
    %28 = vset.pattern.permute.xlu0 0
    %29 = vperm.xlu0 %28, %v23
    %v30 = vpop.permute.xlu0 %29
    %33 = vset.pattern.permute.xlu0 0
    %34 = vperm.xlu0 %33, %v24
    %v35 = vpop.permute.xlu0 %34
    %38 = vset.pattern.permute.xlu0 0
    %39 = vperm.xlu0 %38, %v25
    %v40 = vpop.permute.xlu0 %39
    %43 = vset.pattern.permute.xlu0 0
    %44 = vperm.xlu0 %43, %v26
    %v45 = vpop.permute.xlu0 %44
    %v48 = vperm.slane %v22, 0
    %v50 = vmul.f32 %v30, %v48
    %v51 = vmul.f32 %v35, %v48
    %v52 = vmul.f32 %v40, %v48
    %v53 = vmul.f32 %v45, %v48
    %v54 = vld [vmem:[%s2] sm:$0xff]
    %v55 = vld [vmem:[%s2 + $0x8] sm:$0xff]
    %v56 = vld [vmem:[%s2 + $0x10] sm:$0xff]
    %v57 = vld [vmem:[%s2 + $0x18] sm:$0xff]
    %59 = vset.pattern.permute.xlu0 0
    %60 = vperm.xlu0 %59, %v54
    %v61 = vpop.permute.xlu0 %60
    %64 = vset.pattern.permute.xlu0 0
    %65 = vperm.xlu0 %64, %v55
    %v66 = vpop.permute.xlu0 %65
    %69 = vset.pattern.permute.xlu0 0
    %70 = vperm.xlu0 %69, %v56
    %v71 = vpop.permute.xlu0 %70
    %74 = vset.pattern.permute.xlu0 0
    %75 = vperm.xlu0 %74, %v57
    %v76 = vpop.permute.xlu0 %75
    %v78 = vadd.f32 %v50, %v61
    %v79 = vadd.f32 %v51, %v66
    %v80 = vadd.f32 %v52, %v71
    %v81 = vadd.f32 %v53, %v76
    %v82 = vmax.f32 %v78, 0.0
    %v83 = vmax.f32 %v79, 0.0
    %v84 = vmax.f32 %v80, 0.0
    %v85 = vmax.f32 %v81, 0.0
    %v86 = vld [vmem:[%s3] sm:$0xff]
    %v87 = vld [vmem:[%s3 + $0x8] sm:$0xff]
    %v88 = vld [vmem:[%s3 + $0x10] sm:$0xff]
    %v89 = vld [vmem:[%s3 + $0x18] sm:$0xff]
    %91 = vset.pattern.permute.xlu0 0
    %92 = vperm.xlu0 %91, %v86
    %v93 = vpop.permute.xlu0 %92
    %96 = vset.pattern.permute.xlu0 0
    %97 = vperm.xlu0 %96, %v87
    %v98 = vpop.permute.xlu0 %97
    %101 = vset.pattern.permute.xlu0 0
    %102 = vperm.xlu0 %101, %v88
    %v103 = vpop.permute.xlu0 %102
    %106 = vset.pattern.permute.xlu0 0
    %107 = vperm.xlu0 %106, %v89
    %v108 = vpop.permute.xlu0 %107
    %v110 = vmul.f32 %v82, %v93
    %v111 = vmul.f32 %v83, %v98
    %v112 = vmul.f32 %v84, %v103
    %v113 = vmul.f32 %v85, %v108
    %vm114 = vcmask 818176
    %v115 = vsel %vm114, %v110, 0.0
    %v116 = vsel %vm114, %v111, 0.0
    %v117 = vadd.f32 %v115, %v116
    %v118 = vsel %vm114, %v112, 0.0
    %v119 = vadd.f32 %v117, %v118
    %v120 = vsel %vm114, %v113, 0.0
    %v121 = vadd.f32 %v119, %v120
    %v122 = vrot.slane %v121, 4
    %v123 = vadd.f32 %v121, %v122
    %v124 = vrot.slane %v123, 2
    %v125 = vadd.f32 %v123, %v124
    %v126 = vrot.slane %v125, 1
    %v127 = vadd.f32 %v125, %v126
    %s128 = sld [smem:[#allocation2]]
    %v129 = vstv %s128
    %v130 = vadd.f32 %v127, %v129
    %vm131 = vcmask 811008
    %132 = vst.msk [vmem:[#allocation3] sm:$0x1] %vm131, %v130
    // Predicated region
    $region22: #{net_forward.1} parent=1 // pred_check
      _
    $region23: #{net_forward.1} parent=1 // pred_check_branch
      %134 = sbr.rel (0) target = $region25
    $region24: #{net_forward.1} parent=1 // pred_region
      %136 = vsyncadd [#allocation4], 0
      %s138 = sshll.u32 [#allocation3], 4
      %s139 = int_to_ptr.vmem [resolvable:$true] %s138
      %s140 = sshll.u32 %s5, 4
      %s141 = int_to_ptr.hbm [resolvable:$true] %s140
      %143 = dma.vmem_to_hbm [thread:$0]  %s139, 16, %s141, [#allocation4]
    $region25: #{net_forward.1} parent=1 // pred_fallthru
      _
    // Predicated region
    $region26: #{net_forward.1} parent=1 // pred_check
      _
    $region27: #{net_forward.1} parent=1 // pred_check_branch
      %145 = sbr.rel (0) target = $region29
    $region28: #{net_forward.1} parent=1 // pred_region
      %147 = dma.done [#allocation4], 16
    $region29: #{net_forward.1} parent=1 // pred_fallthru
      _
    %148 = vsyncpa [#allocation4], 1

</llo_original>
